<compile_context>
chip_gen: v5e
topology: v5e:2x2
jax: 0.10.0
libtpu: 0.0.40
codegen_flags: <defaults>
</compile_context>

<pallas_src>
import functools

import jax
import jax.numpy as jnp
import numpy as np
from jax.experimental import pallas as pl
from jax.experimental.pallas import tpu as pltpu


def _round_up(x, m):
    return ((x + m - 1) // m) * m


def _matcher_cost_kernel(logits_ref, onehot_ref, curves_ref, basis_ref, out_ref,
                         *, n_terms, tn, cost_class_w):
    # ---- classification cost: -cost_class * softmax(logits) @ onehot^T -------
    # exp(x - max) -> MXU matmul with the one-hot matrix -> per-row 1/sum via
    # EUP reciprocal + one Newton step (full f32 accuracy).
    logits = logits_ref[...]                                     # (BN, Cpad)
    m = jnp.max(logits, axis=-1, keepdims=True)
    e = jnp.exp(logits - m)
    denom = jnp.sum(e, axis=-1, keepdims=True)                   # (BN, 1)
    unnorm = jnp.dot(e, onehot_ref[...],
                     preferred_element_type=jnp.float32)         # (BN, TN)
    r = pl.reciprocal(denom, approx=True)
    r = r * (2.0 - denom * r)                                    # Newton refine
    out = unnorm * (r * (-cost_class_w))                         # acc init, no zeros

    # ---- curve + endpoint costs: sum_j |curves_aug @ basis_j| ----------------
    # Term j's basis slice already carries (per target column):
    #   poly term p : rows [s, s*y, s*y^2, s*y^3, 0..0, s*xs]   (s = valid*w*cw/10)
    #   endpoint k  : rows [0,0,0,0, ew_k selector,  ..., ew_k*geo_k]
    # and curves_aug = [b0,b1,b2,b3, low_y,up_y,low_x,up_x, -1, 0...], so each
    # small matmul directly yields the signed, pre-weighted difference.
    curves = curves_ref[...]                                     # (BN, K)
    for j in range(n_terms):                                     # small static unroll
        lo = j * tn
        diff = jnp.dot(curves, basis_ref[:, lo:lo + tn],
                       preferred_element_type=jnp.float32)       # (BN, TN)
        out = out + jnp.abs(diff)

    out_ref[...] = out


def hungarian_matcher_cost(pred_logits, pred_curves, targets,
                           cost_class=1.0, curves_weight=1.0,
                           lower_weight=1.0, upper_weight=1.0,
                           block_n=128, block_t=256):
    """Computes the (bs, num_queries, T) matching-cost matrix with a Pallas kernel."""
    bs, nq, num_cls = pred_logits.shape
    N = bs * nq

    tgt_all = jnp.concatenate(targets, axis=0).astype(jnp.float32)   # (T, 5+2P)
    T = tgt_all.shape[0]
    P = (tgt_all.shape[1] - 5) // 2

    # ---- glue: gather/one-hot + operand folding (tiny, not the hot path) ----
    tgt_ids = tgt_all[:, 0].astype(jnp.int32)
    onehot_t = jax.nn.one_hot(tgt_ids, num_cls, dtype=jnp.float32).T  # (C, T)
    geo = tgt_all[:, 1:5]                                             # (T, 4)
    tgt_xs = tgt_all[:, 5:5 + P]                                      # (T, P)
    tgt_ys = tgt_all[:, 5 + P:5 + 2 * P]                              # (T, P)
    valid = (tgt_xs >= 0).astype(jnp.float32)                         # (T, P)
    # Guard against all-invalid targets (reference would produce inf/NaN).
    per_tgt = jnp.maximum(jnp.sum(valid, axis=1), 1.0)
    weights = jnp.sqrt(jnp.sum(valid) / per_tgt)
    weights = weights / jnp.max(weights)                              # (T,)
    # Fold valid mask, per-target weight and curves_weight/10 into the operands:
    # s >= 0 so  s*|xs - poly| == |s*xs - s*poly|.
    s = valid * (weights * (float(curves_weight) / 10.0))[:, None]    # (T, P)

    ew = [0.5 * float(lower_weight), 0.5 * float(upper_weight),
          0.5 * float(lower_weight), 0.5 * float(upper_weight)]       # endpoint weights

    K = 16                       # augmented-curve width (8 curve cols, -1, zero pad)
    n_terms = P + 4              # P poly points + 4 endpoint pseudo-points

    # Basis: (K, n_terms, T).  Each column is one (term, target) pair.
    basis = jnp.zeros((K, n_terms, T), jnp.float32)
    basis = basis.at[0, :P, :].set(s.T)
    basis = basis.at[1, :P, :].set((s * tgt_ys).T)
    basis = basis.at[2, :P, :].set((s * tgt_ys * tgt_ys).T)
    basis = basis.at[3, :P, :].set((s * tgt_ys * tgt_ys * tgt_ys).T)
    basis = basis.at[8, :P, :].set((s * tgt_xs).T)                    # pairs with -1 col
    for k in range(4):                                                # endpoint pseudo-points
        basis = basis.at[4 + k, P + k, :].set(jnp.full((T,), ew[k], jnp.float32))
        basis = basis.at[8, P + k, :].set(ew[k] * geo[:, k])

    logits = pred_logits.reshape(N, num_cls).astype(jnp.float32)
    curves = pred_curves.reshape(N, 8).astype(jnp.float32)
    curves_aug = jnp.concatenate(
        [curves,
         -jnp.ones((N, 1), jnp.float32),
         jnp.zeros((N, K - 9), jnp.float32)], axis=1)                 # (N, K)

    # ---- pad to TPU-friendly shapes ------------------------------------------
    BN = min(block_n, _round_up(N, 8))            # don't over-pad tiny N
    Npad = _round_up(N, BN)
    Cpad = _round_up(num_cls, 128)
    if T <= block_t:
        TN = _round_up(max(T, 1), 128)
        Tpad = TN
    else:
        TN = block_t                              # 256 keeps acc <= 32 vregs
        Tpad = _round_up(T, TN)
    n_t_tiles = Tpad // TN
    n_row_tiles = Npad // BN

    logits_p = jnp.pad(logits, ((0, Npad - N), (0, Cpad - num_cls)),
                       constant_values=-1e9)
    curves_p = jnp.pad(curves_aug, ((0, Npad - N), (0, 0)))
    onehot_p = jnp.pad(onehot_t, ((0, Cpad - num_cls), (0, Tpad - T)))
    basis_p = jnp.pad(basis, ((0, 0), (0, 0), (0, Tpad - T)))
    # Group basis columns by T-tile so each grid step j reads one contiguous
    # (K, n_terms*TN) block whose columns are ordered (term, local_t).
    basis_g = (basis_p.reshape(K, n_terms, n_t_tiles, TN)
                       .transpose(0, 2, 1, 3)
                       .reshape(K, n_t_tiles * n_terms * TN))

    # Rows innermost: the (larger) target-side blocks are fetched once per
    # outer step instead of being re-DMA'd every inner step.
    grid = (n_t_tiles, n_row_tiles)

    kernel = functools.partial(
        _matcher_cost_kernel,
        n_terms=n_terms,
        tn=TN,
        cost_class_w=float(cost_class),
    )

    steps = n_t_tiles * n_row_tiles
    cost_est = pl.CostEstimate(
        flops=int(steps * (2 * BN * Cpad * TN + 2 * BN * K * TN * n_terms)),
        transcendentals=int(steps * BN * Cpad),
        bytes_accessed=int(4 * (n_t_tiles * Npad * (Cpad + K)
                                + Cpad * Tpad + K * n_terms * Tpad + Npad * Tpad)),
    )

    c_padded = pl.pallas_call(
        kernel,
        out_shape=jax.ShapeDtypeStruct((Npad, Tpad), jnp.float32),
        grid_spec=pltpu.PrefetchScalarGridSpec(
            num_scalar_prefetch=0,
            grid=grid,
            in_specs=[
                pl.BlockSpec((BN, Cpad), lambda j, i: (i, 0)),          # logits
                pl.BlockSpec((Cpad, TN), lambda j, i: (0, j)),          # one-hot^T
                pl.BlockSpec((BN, K), lambda j, i: (i, 0)),             # augmented curves
                pl.BlockSpec((K, n_terms * TN), lambda j, i: (0, j)),   # folded basis
            ],
            out_specs=pl.BlockSpec((BN, TN), lambda j, i: (i, j)),
        ),
        compiler_params=pltpu.CompilerParams(
            dimension_semantics=("parallel", "parallel"),
            vmem_limit_bytes=32 * 1024 * 1024),
        cost_estimate=cost_est,
    )(logits_p, onehot_p, curves_p, basis_g)

    return c_padded[:N, :T].reshape(bs, nq, T)


def _reference_cost(pred_logits, pred_curves, targets,
                    cost_class=1.0, curves_weight=1.0,
                    lower_weight=1.0, upper_weight=1.0):
    """Pure-JAX reference matching the PyTorch semantics."""
    bs, nq, num_cls = pred_logits.shape
    N = bs * nq
    tgt_all = jnp.concatenate(targets, axis=0).astype(jnp.float32)
    P = (tgt_all.shape[1] - 5) // 2

    out_prob = jax.nn.softmax(pred_logits.reshape(N, num_cls).astype(jnp.float32), axis=-1)
    tgt_ids = tgt_all[:, 0].astype(jnp.int32)
    cost_class_m = -out_prob[:, tgt_ids]

    curves = pred_curves.reshape(N, 8).astype(jnp.float32)
    t_low_y, t_up_y = tgt_all[:, 1], tgt_all[:, 2]
    t_low_x, t_up_x = tgt_all[:, 3], tgt_all[:, 4]
    cost_lower = 0.5 * (jnp.abs(curves[:, 4, None] - t_low_y[None, :]) +
                        jnp.abs(curves[:, 6, None] - t_low_x[None, :]))
    cost_upper = 0.5 * (jnp.abs(curves[:, 5, None] - t_up_y[None, :]) +
                        jnp.abs(curves[:, 7, None] - t_up_x[None, :]))

    xs = tgt_all[:, 5:5 + P]
    ys = tgt_all[:, 5 + P:5 + 2 * P]
    valid = (xs >= 0).astype(jnp.float32)
    w = jnp.sqrt(jnp.sum(valid) / jnp.sum(valid, axis=1))
    w = w / jnp.max(w)

    y = ys[None, :, :]                                     # (1, T, P)
    b0 = curves[:, 0, None, None]
    b1 = curves[:, 1, None, None]
    b2 = curves[:, 2, None, None]
    b3 = curves[:, 3, None, None]
    poly = b3 * y ** 3 + b2 * y ** 2 + b1 * y + b0          # (N, T, P)
    cost_polys = jnp.sum(valid[None] * jnp.abs(xs[None] - poly), axis=-1) * w[None, :]

    C = (cost_class * cost_class_m + curves_weight * cost_polys / 10.0 +
         lower_weight * cost_lower + upper_weight * cost_upper)
    return C.reshape(bs, nq, -1)


if __name__ == "__main__":
    key = jax.random.PRNGKey(0)
    bs, nq, num_cls, P = 2, 8, 3, 8
    sizes = [3, 2]                      # targets per image -> T = 5

    k1, k2, k3, k4 = jax.random.split(key, 4)
    pred_logits = jax.random.normal(k1, (bs, nq, num_cls), dtype=jnp.float32)
    pred_curves = jax.random.uniform(k2, (bs, nq, 8), dtype=jnp.float32)

    # Build deterministic synthetic targets: [cls, low_y, up_y, low_x, up_x, xs(P), ys(P)]
    targets = []
    tkeys = jax.random.split(k3, len(sizes))
    for n_i, tk in zip(sizes, tkeys):
        ka, kb, kc, kd = jax.random.split(tk, 4)
        cls = jax.random.randint(ka, (n_i, 1), 0, num_cls).astype(jnp.float32)
        geo = jax.random.uniform(kb, (n_i, 4), dtype=jnp.float32)
        xs = jax.random.uniform(kc, (n_i, P), minval=-0.2, maxval=1.0, dtype=jnp.float32)
        xs = xs.at[:, 0].set(jnp.abs(xs[:, 0]) + 0.1)   # guarantee >=1 valid point per target
        ys = jax.random.uniform(kd, (n_i, P), dtype=jnp.float32)
        targets.append(jnp.concatenate([cls, geo, xs, ys], axis=1))

    C_kernel = hungarian_matcher_cost(pred_logits, pred_curves, targets)
    C_kernel = jax.block_until_ready(C_kernel)

    C_ref = _reference_cost(pred_logits, pred_curves, targets)
    np.testing.assert_allclose(np.asarray(C_kernel), np.asarray(C_ref),
                               rtol=1e-4, atol=1e-4)

    print("KERNEL_OK")
</pallas_src>

<mosaic_0001>
module attributes {stable_mosaic.version = 11 : i64} {
  func.func @_matcher_cost_kernel(%arg0: i32, %arg1: i32, %arg2: memref<16x128xf32, #tpu.memory_space<vmem>>, %arg3: memref<128x128xf32, #tpu.memory_space<vmem>>, %arg4: memref<16x16xf32, #tpu.memory_space<vmem>>, %arg5: memref<16x1536xf32, #tpu.memory_space<vmem>>, %arg6: memref<16x128xf32, #tpu.memory_space<vmem>>) attributes {dimension_semantics = [#tpu.dimension_semantics<parallel>, #tpu.dimension_semantics<parallel>], iteration_bounds = array<i64: 1, 1>, scalar_prefetch = 0 : i64, scratch_operands = 0 : i64, tpu.core_type = #tpu.core_type<tc>, window_params = [{transform_indices = @transform_0, window_bounds = array<i64: 16, 128>}, {transform_indices = @transform_1, window_bounds = array<i64: 128, 128>}, {transform_indices = @transform_2, window_bounds = array<i64: 16, 16>}, {transform_indices = @transform_3, window_bounds = array<i64: 16, 1536>}, {transform_indices = @transform_4, window_bounds = array<i64: 16, 128>}]} {
    %c0 = arith.constant 0 : index
    %c0_0 = arith.constant 0 : index
    %0 = vector.load %arg2[%c0, %c0_0] : memref<16x128xf32, #tpu.memory_space<vmem>>, vector<16x128xf32>
    %cst = arith.constant dense<0xFF800000> : vector<16xf32>
    %1 = vector.multi_reduction <maximumf>, %0, %cst [1] : vector<16x128xf32> to vector<16xf32>
    %2 = vector.shape_cast %1 : vector<16xf32> to vector<16x1xf32>
    %3 = vector.broadcast %2 : vector<16x1xf32> to vector<16x128xf32>
    %4 = arith.subf %0, %3 : vector<16x128xf32>
    %5 = math.exp %4 : vector<16x128xf32>
    %cst_1 = arith.constant dense<0.000000e+00> : vector<16xf32>
    %6 = vector.multi_reduction <add>, %5, %cst_1 [1] : vector<16x128xf32> to vector<16xf32>
    %7 = vector.shape_cast %6 : vector<16xf32> to vector<16x1xf32>
    %c0_2 = arith.constant 0 : index
    %c0_3 = arith.constant 0 : index
    %8 = vector.load %arg3[%c0_2, %c0_3] : memref<128x128xf32, #tpu.memory_space<vmem>>, vector<128x128xf32>
    %cst_4 = arith.constant dense<0.000000e+00> : vector<16x128xf32>
    %9 = tpu.matmul %5, %8, %cst_4 {dimension_numbers = #tpu.dot_dimension_numbers<[1], [0], [0], [1], [0, 0, 1, 1], [], []>} : vector<16x128xf32>, vector<128x128xf32>, vector<16x128xf32> -> vector<16x128xf32>
    %10 = tpu.reciprocal %7 {approx = true} : vector<16x1xf32> -> vector<16x1xf32>
    %11 = arith.mulf %7, %10 : vector<16x1xf32>
    %cst_5 = arith.constant 2.000000e+00 : f32
    %12 = vector.broadcast %cst_5 : f32 to vector<16x1xf32>
    %13 = arith.subf %12, %11 : vector<16x1xf32>
    %14 = arith.mulf %10, %13 : vector<16x1xf32>
    %cst_6 = arith.constant -1.000000e+00 : f32
    %15 = vector.broadcast %cst_6 : f32 to vector<16x1xf32>
    %16 = arith.mulf %14, %15 : vector<16x1xf32>
    %17 = vector.broadcast %16 : vector<16x1xf32> to vector<16x128xf32>
    %18 = arith.mulf %9, %17 : vector<16x128xf32>
    %c0_7 = arith.constant 0 : index
    %c0_8 = arith.constant 0 : index
    %19 = vector.load %arg4[%c0_7, %c0_8] : memref<16x16xf32, #tpu.memory_space<vmem>>, vector<16x16xf32>
    %c0_9 = arith.constant 0 : index
    %c0_10 = arith.constant 0 : index
    %20 = vector.load %arg5[%c0_9, %c0_10] : memref<16x1536xf32, #tpu.memory_space<vmem>>, vector<16x128xf32>
    %cst_11 = arith.constant dense<0.000000e+00> : vector<16x128xf32>
    %21 = tpu.matmul %19, %20, %cst_11 {dimension_numbers = #tpu.dot_dimension_numbers<[1], [0], [0], [1], [0, 0, 1, 1], [], []>} : vector<16x16xf32>, vector<16x128xf32>, vector<16x128xf32> -> vector<16x128xf32>
    %22 = math.absf %21 : vector<16x128xf32>
    %23 = arith.addf %18, %22 : vector<16x128xf32>
    %c0_12 = arith.constant 0 : index
    %c128 = arith.constant 128 : index
    %24 = vector.load %arg5[%c0_12, %c128] : memref<16x1536xf32, #tpu.memory_space<vmem>>, vector<16x128xf32>
    %cst_13 = arith.constant dense<0.000000e+00> : vector<16x128xf32>
    %25 = tpu.matmul %19, %24, %cst_13 {dimension_numbers = #tpu.dot_dimension_numbers<[1], [0], [0], [1], [0, 0, 1, 1], [], []>} : vector<16x16xf32>, vector<16x128xf32>, vector<16x128xf32> -> vector<16x128xf32>
    %26 = math.absf %25 : vector<16x128xf32>
    %27 = arith.addf %23, %26 : vector<16x128xf32>
    %c0_14 = arith.constant 0 : index
    %c256 = arith.constant 256 : index
    %28 = vector.load %arg5[%c0_14, %c256] : memref<16x1536xf32, #tpu.memory_space<vmem>>, vector<16x128xf32>
    %cst_15 = arith.constant dense<0.000000e+00> : vector<16x128xf32>
    %29 = tpu.matmul %19, %28, %cst_15 {dimension_numbers = #tpu.dot_dimension_numbers<[1], [0], [0], [1], [0, 0, 1, 1], [], []>} : vector<16x16xf32>, vector<16x128xf32>, vector<16x128xf32> -> vector<16x128xf32>
    %30 = math.absf %29 : vector<16x128xf32>
    %31 = arith.addf %27, %30 : vector<16x128xf32>
    %c0_16 = arith.constant 0 : index
    %c384 = arith.constant 384 : index
    %32 = vector.load %arg5[%c0_16, %c384] : memref<16x1536xf32, #tpu.memory_space<vmem>>, vector<16x128xf32>
    %cst_17 = arith.constant dense<0.000000e+00> : vector<16x128xf32>
    %33 = tpu.matmul %19, %32, %cst_17 {dimension_numbers = #tpu.dot_dimension_numbers<[1], [0], [0], [1], [0, 0, 1, 1], [], []>} : vector<16x16xf32>, vector<16x128xf32>, vector<16x128xf32> -> vector<16x128xf32>
    %34 = math.absf %33 : vector<16x128xf32>
    %35 = arith.addf %31, %34 : vector<16x128xf32>
    %c0_18 = arith.constant 0 : index
    %c512 = arith.constant 512 : index
    %36 = vector.load %arg5[%c0_18, %c512] : memref<16x1536xf32, #tpu.memory_space<vmem>>, vector<16x128xf32>
    %cst_19 = arith.constant dense<0.000000e+00> : vector<16x128xf32>
    %37 = tpu.matmul %19, %36, %cst_19 {dimension_numbers = #tpu.dot_dimension_numbers<[1], [0], [0], [1], [0, 0, 1, 1], [], []>} : vector<16x16xf32>, vector<16x128xf32>, vector<16x128xf32> -> vector<16x128xf32>
    %38 = math.absf %37 : vector<16x128xf32>
    %39 = arith.addf %35, %38 : vector<16x128xf32>
    %c0_20 = arith.constant 0 : index
    %c640 = arith.constant 640 : index
    %40 = vector.load %arg5[%c0_20, %c640] : memref<16x1536xf32, #tpu.memory_space<vmem>>, vector<16x128xf32>
    %cst_21 = arith.constant dense<0.000000e+00> : vector<16x128xf32>
    %41 = tpu.matmul %19, %40, %cst_21 {dimension_numbers = #tpu.dot_dimension_numbers<[1], [0], [0], [1], [0, 0, 1, 1], [], []>} : vector<16x16xf32>, vector<16x128xf32>, vector<16x128xf32> -> vector<16x128xf32>
    %42 = math.absf %41 : vector<16x128xf32>
    %43 = arith.addf %39, %42 : vector<16x128xf32>
    %c0_22 = arith.constant 0 : index
    %c768 = arith.constant 768 : index
    %44 = vector.load %arg5[%c0_22, %c768] : memref<16x1536xf32, #tpu.memory_space<vmem>>, vector<16x128xf32>
    %cst_23 = arith.constant dense<0.000000e+00> : vector<16x128xf32>
    %45 = tpu.matmul %19, %44, %cst_23 {dimension_numbers = #tpu.dot_dimension_numbers<[1], [0], [0], [1], [0, 0, 1, 1], [], []>} : vector<16x16xf32>, vector<16x128xf32>, vector<16x128xf32> -> vector<16x128xf32>
    %46 = math.absf %45 : vector<16x128xf32>
    %47 = arith.addf %43, %46 : vector<16x128xf32>
    %c0_24 = arith.constant 0 : index
    %c896 = arith.constant 896 : index
    %48 = vector.load %arg5[%c0_24, %c896] : memref<16x1536xf32, #tpu.memory_space<vmem>>, vector<16x128xf32>
    %cst_25 = arith.constant dense<0.000000e+00> : vector<16x128xf32>
    %49 = tpu.matmul %19, %48, %cst_25 {dimension_numbers = #tpu.dot_dimension_numbers<[1], [0], [0], [1], [0, 0, 1, 1], [], []>} : vector<16x16xf32>, vector<16x128xf32>, vector<16x128xf32> -> vector<16x128xf32>
    %50 = math.absf %49 : vector<16x128xf32>
    %51 = arith.addf %47, %50 : vector<16x128xf32>
    %c0_26 = arith.constant 0 : index
    %c1024 = arith.constant 1024 : index
    %52 = vector.load %arg5[%c0_26, %c1024] : memref<16x1536xf32, #tpu.memory_space<vmem>>, vector<16x128xf32>
    %cst_27 = arith.constant dense<0.000000e+00> : vector<16x128xf32>
    %53 = tpu.matmul %19, %52, %cst_27 {dimension_numbers = #tpu.dot_dimension_numbers<[1], [0], [0], [1], [0, 0, 1, 1], [], []>} : vector<16x16xf32>, vector<16x128xf32>, vector<16x128xf32> -> vector<16x128xf32>
    %54 = math.absf %53 : vector<16x128xf32>
    %55 = arith.addf %51, %54 : vector<16x128xf32>
    %c0_28 = arith.constant 0 : index
    %c1152 = arith.constant 1152 : index
    %56 = vector.load %arg5[%c0_28, %c1152] : memref<16x1536xf32, #tpu.memory_space<vmem>>, vector<16x128xf32>
    %cst_29 = arith.constant dense<0.000000e+00> : vector<16x128xf32>
    %57 = tpu.matmul %19, %56, %cst_29 {dimension_numbers = #tpu.dot_dimension_numbers<[1], [0], [0], [1], [0, 0, 1, 1], [], []>} : vector<16x16xf32>, vector<16x128xf32>, vector<16x128xf32> -> vector<16x128xf32>
    %58 = math.absf %57 : vector<16x128xf32>
    %59 = arith.addf %55, %58 : vector<16x128xf32>
    %c0_30 = arith.constant 0 : index
    %c1280 = arith.constant 1280 : index
    %60 = vector.load %arg5[%c0_30, %c1280] : memref<16x1536xf32, #tpu.memory_space<vmem>>, vector<16x128xf32>
    %cst_31 = arith.constant dense<0.000000e+00> : vector<16x128xf32>
    %61 = tpu.matmul %19, %60, %cst_31 {dimension_numbers = #tpu.dot_dimension_numbers<[1], [0], [0], [1], [0, 0, 1, 1], [], []>} : vector<16x16xf32>, vector<16x128xf32>, vector<16x128xf32> -> vector<16x128xf32>
    %62 = math.absf %61 : vector<16x128xf32>
    %63 = arith.addf %59, %62 : vector<16x128xf32>
    %c0_32 = arith.constant 0 : index
    %c1408 = arith.constant 1408 : index
    %64 = vector.load %arg5[%c0_32, %c1408] : memref<16x1536xf32, #tpu.memory_space<vmem>>, vector<16x128xf32>
    %cst_33 = arith.constant dense<0.000000e+00> : vector<16x128xf32>
    %65 = tpu.matmul %19, %64, %cst_33 {dimension_numbers = #tpu.dot_dimension_numbers<[1], [0], [0], [1], [0, 0, 1, 1], [], []>} : vector<16x16xf32>, vector<16x128xf32>, vector<16x128xf32> -> vector<16x128xf32>
    %66 = math.absf %65 : vector<16x128xf32>
    %67 = arith.addf %63, %66 : vector<16x128xf32>
    %c0_34 = arith.constant 0 : index
    %c0_35 = arith.constant 0 : index
    %68 = vector.load %arg6[%c0_34, %c0_35] : memref<16x128xf32, #tpu.memory_space<vmem>>, vector<16x128xf32>
    tpu.vector_store %arg6[%c0_34, %c0_35], %67 {strides = array<i32>} : memref<16x128xf32, #tpu.memory_space<vmem>>, vector<16x128xf32>,
    return
  }
  func.func @transform_0(%arg0: i32, %arg1: i32) -> (i32, i32) {
    %c0_i32 = arith.constant 0 : i32
    %c0_i32_0 = arith.constant 0 : i32
    return %arg1, %c0_i32 : i32, i32
  }
  func.func @transform_1(%arg0: i32, %arg1: i32) -> (i32, i32) {
    %c0_i32 = arith.constant 0 : i32
    %c0_i32_0 = arith.constant 0 : i32
    return %c0_i32, %arg0 : i32, i32
  }
  func.func @transform_2(%arg0: i32, %arg1: i32) -> (i32, i32) {
    %c0_i32 = arith.constant 0 : i32
    %c0_i32_0 = arith.constant 0 : i32
    return %arg1, %c0_i32 : i32, i32
  }
  func.func @transform_3(%arg0: i32, %arg1: i32) -> (i32, i32) {
    %c0_i32 = arith.constant 0 : i32
    %c0_i32_0 = arith.constant 0 : i32
    return %c0_i32, %arg0 : i32, i32
  }
  func.func @transform_4(%arg0: i32, %arg1: i32) -> (i32, i32) {
    %c0_i32 = arith.constant 0 : i32
    return %arg1, %arg0 : i32, i32
  }
}

</mosaic_0001>

<llo_original>
// kernel: tpu_custom_call.1
$region0: #{tpu_custom_call.1}
  #allocation0 [shape = 'u32[]', space=smem, size = 0x4, offset = 0x4, fixed_abs, tag = 'smem constant byte address 0x4 - core index']
  #allocation1 [shape = 'u32[72,128]{1,0:T(1,128)}', space=vmem, size = 0x9000, scoped, tag = 'internal scratch']
  %s0 = inlined_call_operand.hbm [shape: f32[16,128], index: 0, kind: input, shape index: {}]
  %s1 = inlined_call_operand.hbm [shape: f32[128,128], index: 1, kind: input, shape index: {}]
  %s2 = inlined_call_operand.hbm [shape: f32[16,16], index: 2, kind: input, shape index: {}]
  %s3 = inlined_call_operand.hbm [shape: f32[16,1536], index: 3, kind: input, shape index: {}]
  %s4 = inlined_call_operand.hbm [shape: f32[16,128], index: 4, kind: output, shape index: {}]
  %s5 = sld [smem:[#allocation0]]
  $region42: #{tpu_custom_call.1} parent=0
    _
  %s7 = ssub.s32 1, %s5
  %s8 = scalar_select 0, %s7, %s5
  $region1: #{tpu_custom_call.1} parent=0
    #allocation2 [shape = 'u8[8192]{0}', space=vmem, size = 0x2000, scoped, tag = 'input window, operand 0, single buffered']
    #allocation3 [shape = 's32[1]{0}', space=sflag, size = 0x4, scoped, tag = 'scoped memory for tpu_custom_call.1']
    #allocation4 [shape = 's32[1]{0}', space=sflag, size = 0x4, scoped, tag = 'scoped memory for tpu_custom_call.1']
    #allocation5 [shape = 'u8[65536]{0}', space=vmem, size = 0x10000, scoped, tag = 'input window, operand 1, single buffered']
    #allocation6 [shape = 's32[1]{0}', space=sflag, size = 0x4, scoped, tag = 'scoped memory for tpu_custom_call.1']
    #allocation7 [shape = 'u8[8192]{0}', space=vmem, size = 0x2000, scoped, tag = 'input window, operand 2, single buffered']
    #allocation8 [shape = 'u8[98304]{0}', space=vmem, size = 0x18000, scoped, tag = 'input window, operand 3, single buffered']
    #allocation9 [shape = 's32[1]{0}', space=sflag, size = 0x4, scoped, tag = 'scoped memory for tpu_custom_call.1']
    #allocation10 [shape = 'u8[8192]{0}', space=vmem, size = 0x2000, scoped, tag = 'output window, operand 0, single buffered']
    %9 = vsyncpa [#allocation3], 0
    %10 = vsyncpa [#allocation6], 0
    %11 = vsyncpa [#allocation9], 0
    %12 = vsyncpa [#allocation4], 0
    // Predicated region
    $region2: #{tpu_custom_call.1} parent=1 // pred_check
      _
    $region3: #{tpu_custom_call.1} parent=1 // pred_check_branch
      %14 = sbr.rel (0) target = $region5
    $region4: #{tpu_custom_call.1} parent=1 // pred_region
      %16 = vsyncadd [#allocation3], 0
      %s17 = sshll.u32 %s0, 4
      %s18 = int_to_ptr.hbm [resolvable:$true] %s17
      %s19 = sshll.u32 [#allocation2], 4
      %s20 = int_to_ptr.vmem [resolvable:$true] %s19
      %25 = dma.hbm_to_vmem [thread:$0]  %s18, 256, %s20, [#allocation3], 128, 128, 8
    $region5: #{tpu_custom_call.1} parent=1 // pred_fallthru
      _
    // Predicated region
    $region6: #{tpu_custom_call.1} parent=1 // pred_check
      _
    $region7: #{tpu_custom_call.1} parent=1 // pred_check_branch
      %27 = sbr.rel (0) target = $region9
    $region8: #{tpu_custom_call.1} parent=1 // pred_region
      %29 = vsyncadd [#allocation6], 0
      %s30 = sshll.u32 %s1, 4
      %s31 = int_to_ptr.hbm [resolvable:$true] %s30
      %s32 = sshll.u32 [#allocation5], 4
      %s33 = int_to_ptr.vmem [resolvable:$true] %s32
      %38 = dma.hbm_to_vmem [thread:$0]  %s31, 2048, %s33, [#allocation6], 128, 128, 8
    $region9: #{tpu_custom_call.1} parent=1 // pred_fallthru
      _
    // Predicated region
    $region10: #{tpu_custom_call.1} parent=1 // pred_check
      _
    $region11: #{tpu_custom_call.1} parent=1 // pred_check_branch
      %40 = sbr.rel (0) target = $region13
    $region12: #{tpu_custom_call.1} parent=1 // pred_region
      %42 = vsyncadd [#allocation6], 0
      %s43 = sshll.u32 %s2, 4
      %s44 = int_to_ptr.hbm [resolvable:$true] %s43
      %s45 = sshll.u32 [#allocation7], 4
      %s46 = int_to_ptr.vmem [resolvable:$true] %s45
      %51 = dma.hbm_to_vmem [thread:$0]  %s44, 256, %s46, [#allocation6], 128, 128, 8
    $region13: #{tpu_custom_call.1} parent=1 // pred_fallthru
      _
    // Predicated region
    $region14: #{tpu_custom_call.1} parent=1 // pred_check
      _
    $region15: #{tpu_custom_call.1} parent=1 // pred_check_branch
      %53 = sbr.rel (0) target = $region17
    $region16: #{tpu_custom_call.1} parent=1 // pred_region
      %55 = vsyncadd [#allocation9], 0
      %s56 = sshll.u32 %s3, 4
      %s57 = int_to_ptr.hbm [resolvable:$true] %s56
      %s58 = sshll.u32 [#allocation8], 4
      %s59 = int_to_ptr.vmem [resolvable:$true] %s58
      %64 = dma.hbm_to_vmem [thread:$0]  %s57, 3072, %s59, [#allocation9], 1536, 1536, 96
    $region17: #{tpu_custom_call.1} parent=1 // pred_fallthru
      _
    // Predicated region
    $region18: #{tpu_custom_call.1} parent=1 // pred_check
      _
    $region19: #{tpu_custom_call.1} parent=1 // pred_check_branch
      %66 = sbr.rel (0) target = $region21
    $region20: #{tpu_custom_call.1} parent=1 // pred_region
      %68 = dma.done [#allocation3], 256
    $region21: #{tpu_custom_call.1} parent=1 // pred_fallthru
      _
    // Predicated region
    $region22: #{tpu_custom_call.1} parent=1 // pred_check
      _
    $region23: #{tpu_custom_call.1} parent=1 // pred_check_branch
      %70 = sbr.rel (0) target = $region25
    $region24: #{tpu_custom_call.1} parent=1 // pred_region
      %72 = dma.done [#allocation6], 2048
    $region25: #{tpu_custom_call.1} parent=1 // pred_fallthru
      _
    // Predicated region
    $region26: #{tpu_custom_call.1} parent=1 // pred_check
      _
    $region27: #{tpu_custom_call.1} parent=1 // pred_check_branch
      %74 = sbr.rel (0) target = $region29
    $region28: #{tpu_custom_call.1} parent=1 // pred_region
      %76 = dma.done [#allocation6], 256
    $region29: #{tpu_custom_call.1} parent=1 // pred_fallthru
      _
    // Predicated region
    $region30: #{tpu_custom_call.1} parent=1 // pred_check
      _
    $region31: #{tpu_custom_call.1} parent=1 // pred_check_branch
      %78 = sbr.rel (0) target = $region33
    $region32: #{tpu_custom_call.1} parent=1 // pred_region
      %80 = dma.done [#allocation9], 3072
    $region33: #{tpu_custom_call.1} parent=1 // pred_fallthru
      _
    %v81 = vld [vmem:[#allocation2] sm:$0xff]
    %v82 = vld [vmem:[#allocation2 + $0x8] sm:$0xff]
    %83 = vmax.xlane.f32.xlu0 %v81
    %v84 = vpop.xlane.xlu0 %83
    %85 = vmax.xlane.f32.xlu0 %v82
    %v86 = vpop.xlane.xlu0 %85
    %v87 = vsub.f32 %v81, %v84
    %v88 = vsub.f32 %v82, %v86
    %v89 = vmul.f32 %v87, 1.442695
    %v90 = vpow.pop %v89
    %v91 = vmul.f32 %v88, 1.442695
    %v92 = vpow.pop %v91
    %93 = vadd.xlane.f32.xlu0 %v90
    %v94 = vpop.xlane.xlu0 %93
    %95 = vadd.xlane.f32.xlu0 %v92
    %v96 = vpop.xlane.xlu0 %95
    %v97 = vld [vmem:[#allocation5] sm:$0xff]
    %v98 = vld [vmem:[#allocation5 + $0x8] sm:$0xff]
    %v99 = vld [vmem:[#allocation5 + $0x10] sm:$0xff]
    %v100 = vld [vmem:[#allocation5 + $0x18] sm:$0xff]
    %v101 = vld [vmem:[#allocation5 + $0x20] sm:$0xff]
    %v102 = vld [vmem:[#allocation5 + $0x28] sm:$0xff]
    %v103 = vld [vmem:[#allocation5 + $0x30] sm:$0xff]
    %v104 = vld [vmem:[#allocation5 + $0x38] sm:$0xff]
    %v105 = vld [vmem:[#allocation5 + $0x40] sm:$0xff]
    %v106 = vld [vmem:[#allocation5 + $0x48] sm:$0xff]
    %v107 = vld [vmem:[#allocation5 + $0x50] sm:$0xff]
    %v108 = vld [vmem:[#allocation5 + $0x58] sm:$0xff]
    %v109 = vld [vmem:[#allocation5 + $0x60] sm:$0xff]
    %v110 = vld [vmem:[#allocation5 + $0x68] sm:$0xff]
    %v111 = vld [vmem:[#allocation5 + $0x70] sm:$0xff]
    %v112 = vld [vmem:[#allocation5 + $0x78] sm:$0xff]
    %113 = vmatpush.msra.mxu0 %v112
    %114 = vmatpush.msra.mxu0 %v111
    %115 = vmatpush.msra.mxu0 %v110
    %116 = vmatpush.msra.mxu0 %v109
    %117 = vmatpush.msra.mxu0 %v108
    %118 = vmatpush.msra.mxu0 %v107
    %119 = vmatpush.msra.mxu0 %v106
    %120 = vmatpush.msra.mxu0 %v105
    %121 = vmatpush.msra.mxu0 %v104
    %122 = vmatpush.msra.mxu0 %v103
    %123 = vmatpush.msra.mxu0 %v102
    %124 = vmatpush.msra.mxu0 %v101
    %125 = vmatpush.msra.mxu0 %v100
    %126 = vmatpush.msra.mxu0 %v99
    %127 = vmatpush.msra.mxu0 %v98
    %128 = vmatpush.msra.mxu0 %v97
    %129 = vmatmul.f32.gmra.mxu0 %v90
    %v130 = vpop.f32.mrf.mxu0
    %v131 = vadd.f32 0.0, %v130
    %132 = vmatmul.f32.gmra.mxu0 %v92
    %v133 = vpop.f32.mrf.mxu0
    %v134 = vadd.f32 0.0, %v133
    %135 = vdwg.mxu0
    %v136 = vrcp.pop %v94
    %v137 = vrcp.pop %v96
    %v138 = vmul.f32 %v94, %v136
    %v139 = vmul.f32 %v96, %v137
    %v140 = vsub.f32 2.0, %v138
    %v141 = vsub.f32 2.0, %v139
    %v142 = vmul.f32 %v136, %v140
    %v143 = vmul.f32 %v137, %v141
    %v144 = vmul.f32 %v142, -1.0
    %v145 = vmul.f32 %v143, -1.0
    %v146 = vmul.f32 %v131, %v144
    %v147 = vmul.f32 %v134, %v145
    %v148 = vld [vmem:[#allocation7] sm:$0xff]
    %v149 = vld [vmem:[#allocation7 + $0x8] sm:$0xff]
    %v150 = vld [vmem:[#allocation8] sm:$0xff]
    %v151 = vld [vmem:[#allocation8 + $0x60] sm:$0xff]
    %vm152 = vcmask 130048
    %v154 = vsel %vm152, %v148, 0
    %v157 = vsel %vm152, %v149, 0
    %159 = vmatpush.msra.mxu0 0.0
    %160 = vmatpush.msra.mxu0 0.0
    %161 = vmatpush.msra.mxu0 0.0
    %162 = vmatpush.msra.mxu0 0.0
    %163 = vmatpush.msra.mxu0 0.0
    %164 = vmatpush.msra.mxu0 0.0
    %165 = vmatpush.msra.mxu0 0.0
    %166 = vmatpush.msra.mxu0 0.0
    %167 = vmatpush.msra.mxu0 0.0
    %168 = vmatpush.msra.mxu0 0.0
    %169 = vmatpush.msra.mxu0 0.0
    %170 = vmatpush.msra.mxu0 0.0
    %171 = vmatpush.msra.mxu0 0.0
    %172 = vmatpush.msra.mxu0 0.0
    %173 = vmatpush.msra.mxu0 %v151
    %174 = vmatpush.msra.mxu0 %v150
    %175 = vmatmul.f32.gmra.mxu0 %v154
    %v176 = vpop.f32.mrf.mxu0
    %v177 = vadd.f32 0.0, %v176
    %178 = vmatmul.f32.gmra.mxu0 %v157
    %v179 = vpop.f32.mrf.mxu0
    %v180 = vadd.f32 0.0, %v179
    %181 = vdwg.mxu0
    %v182 = vand.u32 2147483647, %v177
    %v183 = vand.u32 2147483647, %v180
    %v184 = vadd.f32 %v146, %v182
    %v185 = vadd.f32 %v147, %v183
    %v186 = vld [vmem:[#allocation8 + $0x8] sm:$0xff]
    %v187 = vld [vmem:[#allocation8 + $0x68] sm:$0xff]
    %188 = vmatpush.msra.mxu0 0.0
    %189 = vmatpush.msra.mxu0 0.0
    %190 = vmatpush.msra.mxu0 0.0
    %191 = vmatpush.msra.mxu0 0.0
    %192 = vmatpush.msra.mxu0 0.0
    %193 = vmatpush.msra.mxu0 0.0
    %194 = vmatpush.msra.mxu0 0.0
    %195 = vmatpush.msra.mxu0 0.0
    %196 = vmatpush.msra.mxu0 0.0
    %197 = vmatpush.msra.mxu0 0.0
    %198 = vmatpush.msra.mxu0 0.0
    %199 = vmatpush.msra.mxu0 0.0
    %200 = vmatpush.msra.mxu0 0.0
    %201 = vmatpush.msra.mxu0 0.0
    %202 = vmatpush.msra.mxu0 %v187
    %203 = vmatpush.msra.mxu0 %v186
    %204 = vmatmul.f32.gmra.mxu0 %v154
    %v205 = vpop.f32.mrf.mxu0
    %v206 = vadd.f32 0.0, %v205
    %207 = vmatmul.f32.gmra.mxu0 %v157
    %v208 = vpop.f32.mrf.mxu0
    %v209 = vadd.f32 0.0, %v208
    %210 = vdwg.mxu0
    %v211 = vand.u32 2147483647, %v206
    %v212 = vand.u32 2147483647, %v209
    %v213 = vadd.f32 %v184, %v211
    %v214 = vadd.f32 %v185, %v212
    %v215 = vld [vmem:[#allocation8 + $0x10] sm:$0xff]
    %v216 = vld [vmem:[#allocation8 + $0x70] sm:$0xff]
    %217 = vmatpush.msra.mxu0 0.0
    %218 = vmatpush.msra.mxu0 0.0
    %219 = vmatpush.msra.mxu0 0.0
    %220 = vmatpush.msra.mxu0 0.0
    %221 = vmatpush.msra.mxu0 0.0
    %222 = vmatpush.msra.mxu0 0.0
    %223 = vmatpush.msra.mxu0 0.0
    %224 = vmatpush.msra.mxu0 0.0
    %225 = vmatpush.msra.mxu0 0.0
    %226 = vmatpush.msra.mxu0 0.0
    %227 = vmatpush.msra.mxu0 0.0
    %228 = vmatpush.msra.mxu0 0.0
    %229 = vmatpush.msra.mxu0 0.0
    %230 = vmatpush.msra.mxu0 0.0
    %231 = vmatpush.msra.mxu0 %v216
    %232 = vmatpush.msra.mxu0 %v215
    %233 = vmatmul.f32.gmra.mxu0 %v154
    %v234 = vpop.f32.mrf.mxu0
    %v235 = vadd.f32 0.0, %v234
    %236 = vmatmul.f32.gmra.mxu0 %v157
    %v237 = vpop.f32.mrf.mxu0
    %v238 = vadd.f32 0.0, %v237
    %239 = vdwg.mxu0
    %v240 = vand.u32 2147483647, %v235
    %v241 = vand.u32 2147483647, %v238
    %v242 = vadd.f32 %v213, %v240
    %v243 = vadd.f32 %v214, %v241
    %v244 = vld [vmem:[#allocation8 + $0x18] sm:$0xff]
    %v245 = vld [vmem:[#allocation8 + $0x78] sm:$0xff]
    %246 = vmatpush.msra.mxu0 0.0
    %247 = vmatpush.msra.mxu0 0.0
    %248 = vmatpush.msra.mxu0 0.0
    %249 = vmatpush.msra.mxu0 0.0
    %250 = vmatpush.msra.mxu0 0.0
    %251 = vmatpush.msra.mxu0 0.0
    %252 = vmatpush.msra.mxu0 0.0
    %253 = vmatpush.msra.mxu0 0.0
    %254 = vmatpush.msra.mxu0 0.0
    %255 = vmatpush.msra.mxu0 0.0
    %256 = vmatpush.msra.mxu0 0.0
    %257 = vmatpush.msra.mxu0 0.0
    %258 = vmatpush.msra.mxu0 0.0
    %259 = vmatpush.msra.mxu0 0.0
    %260 = vmatpush.msra.mxu0 %v245
    %261 = vmatpush.msra.mxu0 %v244
    %262 = vmatmul.f32.gmra.mxu0 %v154
    %v263 = vpop.f32.mrf.mxu0
    %v264 = vadd.f32 0.0, %v263
    %265 = vmatmul.f32.gmra.mxu0 %v157
    %v266 = vpop.f32.mrf.mxu0
    %v267 = vadd.f32 0.0, %v266
    %268 = vdwg.mxu0
    %v269 = vand.u32 2147483647, %v264
    %v270 = vand.u32 2147483647, %v267
    %v271 = vadd.f32 %v242, %v269
    %v272 = vadd.f32 %v243, %v270
    %v273 = vld [vmem:[#allocation8 + $0x20] sm:$0xff]
    %v274 = vld [vmem:[#allocation8 + $0x80] sm:$0xff]
    %275 = vmatpush.msra.mxu0 0.0
    %276 = vmatpush.msra.mxu0 0.0
    %277 = vmatpush.msra.mxu0 0.0
    %278 = vmatpush.msra.mxu0 0.0
    %279 = vmatpush.msra.mxu0 0.0
    %280 = vmatpush.msra.mxu0 0.0
    %281 = vmatpush.msra.mxu0 0.0
    %282 = vmatpush.msra.mxu0 0.0
    %283 = vmatpush.msra.mxu0 0.0
    %284 = vmatpush.msra.mxu0 0.0
    %285 = vmatpush.msra.mxu0 0.0
    %286 = vmatpush.msra.mxu0 0.0
    %287 = vmatpush.msra.mxu0 0.0
    %288 = vmatpush.msra.mxu0 0.0
    %289 = vmatpush.msra.mxu0 %v274
    %290 = vmatpush.msra.mxu0 %v273
    %291 = vmatmul.f32.gmra.mxu0 %v154
    %v292 = vpop.f32.mrf.mxu0
    %v293 = vadd.f32 0.0, %v292
    %294 = vmatmul.f32.gmra.mxu0 %v157
    %v295 = vpop.f32.mrf.mxu0
    %v296 = vadd.f32 0.0, %v295
    %297 = vdwg.mxu0
    %v298 = vand.u32 2147483647, %v293
    %v299 = vand.u32 2147483647, %v296
    %v300 = vadd.f32 %v271, %v298
    %v301 = vadd.f32 %v272, %v299
    %v302 = vld [vmem:[#allocation8 + $0x28] sm:$0xff]
    %v303 = vld [vmem:[#allocation8 + $0x88] sm:$0xff]
    %304 = vmatpush.msra.mxu0 0.0
    %305 = vmatpush.msra.mxu0 0.0
    %306 = vmatpush.msra.mxu0 0.0
    %307 = vmatpush.msra.mxu0 0.0
    %308 = vmatpush.msra.mxu0 0.0
    %309 = vmatpush.msra.mxu0 0.0
    %310 = vmatpush.msra.mxu0 0.0
    %311 = vmatpush.msra.mxu0 0.0
    %312 = vmatpush.msra.mxu0 0.0
    %313 = vmatpush.msra.mxu0 0.0
    %314 = vmatpush.msra.mxu0 0.0
    %315 = vmatpush.msra.mxu0 0.0
    %316 = vmatpush.msra.mxu0 0.0
    %317 = vmatpush.msra.mxu0 0.0
    %318 = vmatpush.msra.mxu0 %v303
    %319 = vmatpush.msra.mxu0 %v302
    %320 = vmatmul.f32.gmra.mxu0 %v154
    %v321 = vpop.f32.mrf.mxu0
    %v322 = vadd.f32 0.0, %v321
    %323 = vmatmul.f32.gmra.mxu0 %v157
    %v324 = vpop.f32.mrf.mxu0
    %v325 = vadd.f32 0.0, %v324
    %326 = vdwg.mxu0
    %v327 = vand.u32 2147483647, %v322
    %v328 = vand.u32 2147483647, %v325
    %v329 = vadd.f32 %v300, %v327
    %v330 = vadd.f32 %v301, %v328
    %v331 = vld [vmem:[#allocation8 + $0x30] sm:$0xff]
    %v332 = vld [vmem:[#allocation8 + $0x90] sm:$0xff]
    %333 = vmatpush.msra.mxu0 0.0
    %334 = vmatpush.msra.mxu0 0.0
    %335 = vmatpush.msra.mxu0 0.0
    %336 = vmatpush.msra.mxu0 0.0
    %337 = vmatpush.msra.mxu0 0.0
    %338 = vmatpush.msra.mxu0 0.0
    %339 = vmatpush.msra.mxu0 0.0
    %340 = vmatpush.msra.mxu0 0.0
    %341 = vmatpush.msra.mxu0 0.0
    %342 = vmatpush.msra.mxu0 0.0
    %343 = vmatpush.msra.mxu0 0.0
    %344 = vmatpush.msra.mxu0 0.0
    %345 = vmatpush.msra.mxu0 0.0
    %346 = vmatpush.msra.mxu0 0.0
    %347 = vmatpush.msra.mxu0 %v332
    %348 = vmatpush.msra.mxu0 %v331
    %349 = vmatmul.f32.gmra.mxu0 %v154
    %v350 = vpop.f32.mrf.mxu0
    %v351 = vadd.f32 0.0, %v350
    %352 = vmatmul.f32.gmra.mxu0 %v157
    %v353 = vpop.f32.mrf.mxu0
    %v354 = vadd.f32 0.0, %v353
    %355 = vdwg.mxu0
    %v356 = vand.u32 2147483647, %v351
    %v357 = vand.u32 2147483647, %v354
    %v358 = vadd.f32 %v329, %v356
    %v359 = vadd.f32 %v330, %v357
    %v360 = vld [vmem:[#allocation8 + $0x38] sm:$0xff]
    %v361 = vld [vmem:[#allocation8 + $0x98] sm:$0xff]
    %362 = vmatpush.msra.mxu0 0.0
    %363 = vmatpush.msra.mxu0 0.0
    %364 = vmatpush.msra.mxu0 0.0
    %365 = vmatpush.msra.mxu0 0.0
    %366 = vmatpush.msra.mxu0 0.0
    %367 = vmatpush.msra.mxu0 0.0
    %368 = vmatpush.msra.mxu0 0.0
    %369 = vmatpush.msra.mxu0 0.0
    %370 = vmatpush.msra.mxu0 0.0
    %371 = vmatpush.msra.mxu0 0.0
    %372 = vmatpush.msra.mxu0 0.0
    %373 = vmatpush.msra.mxu0 0.0
    %374 = vmatpush.msra.mxu0 0.0
    %375 = vmatpush.msra.mxu0 0.0
    %376 = vmatpush.msra.mxu0 %v361
    %377 = vmatpush.msra.mxu0 %v360
    %378 = vmatmul.f32.gmra.mxu0 %v154
    %v379 = vpop.f32.mrf.mxu0
    %v380 = vadd.f32 0.0, %v379
    %381 = vmatmul.f32.gmra.mxu0 %v157
    %v382 = vpop.f32.mrf.mxu0
    %v383 = vadd.f32 0.0, %v382
    %384 = vdwg.mxu0
    %v385 = vand.u32 2147483647, %v380
    %v386 = vand.u32 2147483647, %v383
    %v387 = vadd.f32 %v358, %v385
    %v388 = vadd.f32 %v359, %v386
    %v389 = vld [vmem:[#allocation8 + $0x40] sm:$0xff]
    %v390 = vld [vmem:[#allocation8 + $0xa0] sm:$0xff]
    %391 = vmatpush.msra.mxu0 0.0
    %392 = vmatpush.msra.mxu0 0.0
    %393 = vmatpush.msra.mxu0 0.0
    %394 = vmatpush.msra.mxu0 0.0
    %395 = vmatpush.msra.mxu0 0.0
    %396 = vmatpush.msra.mxu0 0.0
    %397 = vmatpush.msra.mxu0 0.0
    %398 = vmatpush.msra.mxu0 0.0
    %399 = vmatpush.msra.mxu0 0.0
    %400 = vmatpush.msra.mxu0 0.0
    %401 = vmatpush.msra.mxu0 0.0
    %402 = vmatpush.msra.mxu0 0.0
    %403 = vmatpush.msra.mxu0 0.0
    %404 = vmatpush.msra.mxu0 0.0
    %405 = vmatpush.msra.mxu0 %v390
    %406 = vmatpush.msra.mxu0 %v389
    %407 = vmatmul.f32.gmra.mxu0 %v154
    %v408 = vpop.f32.mrf.mxu0
    %v409 = vadd.f32 0.0, %v408
    %410 = vmatmul.f32.gmra.mxu0 %v157
    %v411 = vpop.f32.mrf.mxu0
    %v412 = vadd.f32 0.0, %v411
    %413 = vdwg.mxu0
    %v414 = vand.u32 2147483647, %v409
    %v415 = vand.u32 2147483647, %v412
    %v416 = vadd.f32 %v387, %v414
    %v417 = vadd.f32 %v388, %v415
    %v418 = vld [vmem:[#allocation8 + $0x48] sm:$0xff]
    %v419 = vld [vmem:[#allocation8 + $0xa8] sm:$0xff]
    %420 = vmatpush.msra.mxu0 0.0
    %421 = vmatpush.msra.mxu0 0.0
    %422 = vmatpush.msra.mxu0 0.0
    %423 = vmatpush.msra.mxu0 0.0
    %424 = vmatpush.msra.mxu0 0.0
    %425 = vmatpush.msra.mxu0 0.0
    %426 = vmatpush.msra.mxu0 0.0
    %427 = vmatpush.msra.mxu0 0.0
    %428 = vmatpush.msra.mxu0 0.0
    %429 = vmatpush.msra.mxu0 0.0
    %430 = vmatpush.msra.mxu0 0.0
    %431 = vmatpush.msra.mxu0 0.0
    %432 = vmatpush.msra.mxu0 0.0
    %433 = vmatpush.msra.mxu0 0.0
    %434 = vmatpush.msra.mxu0 %v419
    %435 = vmatpush.msra.mxu0 %v418
    %436 = vmatmul.f32.gmra.mxu0 %v154
    %v437 = vpop.f32.mrf.mxu0
    %v438 = vadd.f32 0.0, %v437
    %439 = vmatmul.f32.gmra.mxu0 %v157
    %v440 = vpop.f32.mrf.mxu0
    %v441 = vadd.f32 0.0, %v440
    %442 = vdwg.mxu0
    %v443 = vand.u32 2147483647, %v438
    %v444 = vand.u32 2147483647, %v441
    %v445 = vadd.f32 %v416, %v443
    %v446 = vadd.f32 %v417, %v444
    %v447 = vld [vmem:[#allocation8 + $0x50] sm:$0xff]
    %v448 = vld [vmem:[#allocation8 + $0xb0] sm:$0xff]
    %449 = vmatpush.msra.mxu0 0.0
    %450 = vmatpush.msra.mxu0 0.0
    %451 = vmatpush.msra.mxu0 0.0
    %452 = vmatpush.msra.mxu0 0.0
    %453 = vmatpush.msra.mxu0 0.0
    %454 = vmatpush.msra.mxu0 0.0
    %455 = vmatpush.msra.mxu0 0.0
    %456 = vmatpush.msra.mxu0 0.0
    %457 = vmatpush.msra.mxu0 0.0
    %458 = vmatpush.msra.mxu0 0.0
    %459 = vmatpush.msra.mxu0 0.0
    %460 = vmatpush.msra.mxu0 0.0
    %461 = vmatpush.msra.mxu0 0.0
    %462 = vmatpush.msra.mxu0 0.0
    %463 = vmatpush.msra.mxu0 %v448
    %464 = vmatpush.msra.mxu0 %v447
    %465 = vmatmul.f32.gmra.mxu0 %v154
    %v466 = vpop.f32.mrf.mxu0
    %v467 = vadd.f32 0.0, %v466
    %468 = vmatmul.f32.gmra.mxu0 %v157
    %v469 = vpop.f32.mrf.mxu0
    %v470 = vadd.f32 0.0, %v469
    %471 = vdwg.mxu0
    %v472 = vand.u32 2147483647, %v467
    %v473 = vand.u32 2147483647, %v470
    %v474 = vadd.f32 %v445, %v472
    %v475 = vadd.f32 %v446, %v473
    %v476 = vld [vmem:[#allocation8 + $0x58] sm:$0xff]
    %v477 = vld [vmem:[#allocation8 + $0xb8] sm:$0xff]
    %478 = vmatpush.msra.mxu0 0.0
    %479 = vmatpush.msra.mxu0 0.0
    %480 = vmatpush.msra.mxu0 0.0
    %481 = vmatpush.msra.mxu0 0.0
    %482 = vmatpush.msra.mxu0 0.0
    %483 = vmatpush.msra.mxu0 0.0
    %484 = vmatpush.msra.mxu0 0.0
    %485 = vmatpush.msra.mxu0 0.0
    %486 = vmatpush.msra.mxu0 0.0
    %487 = vmatpush.msra.mxu0 0.0
    %488 = vmatpush.msra.mxu0 0.0
    %489 = vmatpush.msra.mxu0 0.0
    %490 = vmatpush.msra.mxu0 0.0
    %491 = vmatpush.msra.mxu0 0.0
    %492 = vmatpush.msra.mxu0 %v477
    %493 = vmatpush.msra.mxu0 %v476
    %494 = vmatmul.f32.gmra.mxu0 %v154
    %v495 = vpop.f32.mrf.mxu0
    %v496 = vadd.f32 0.0, %v495
    %497 = vmatmul.f32.gmra.mxu0 %v157
    %v498 = vpop.f32.mrf.mxu0
    %v499 = vadd.f32 0.0, %v498
    %500 = vdwg.mxu0
    %v501 = vand.u32 2147483647, %v496
    %v502 = vand.u32 2147483647, %v499
    %v503 = vadd.f32 %v474, %v501
    %v504 = vadd.f32 %v475, %v502
    %505 = vst [vmem:[#allocation10] sm:$0xff] %v503
    %506 = vst [vmem:[#allocation10 + $0x8] sm:$0xff] %v504
    // Predicated region
    $region34: #{tpu_custom_call.1} parent=1 // pred_check
      _
    $region35: #{tpu_custom_call.1} parent=1 // pred_check_branch
      %508 = sbr.rel (0) target = $region37
    $region36: #{tpu_custom_call.1} parent=1 // pred_region
      %510 = vsyncadd [#allocation4], 0
      %s511 = sshll.u32 [#allocation10], 4
      %s512 = int_to_ptr.vmem [resolvable:$true] %s511
      %s513 = sshll.u32 %s4, 4
      %s514 = int_to_ptr.hbm [resolvable:$true] %s513
      %519 = dma.vmem_to_hbm [thread:$0]  %s512, 256, %s514, [#allocation4], 128, 128, 8
    $region37: #{tpu_custom_call.1} parent=1 // pred_fallthru
      _
    // Predicated region
    $region38: #{tpu_custom_call.1} parent=1 // pred_check
      _
    $region39: #{tpu_custom_call.1} parent=1 // pred_check_branch
      %521 = sbr.rel (0) target = $region41
    $region40: #{tpu_custom_call.1} parent=1 // pred_region
      %523 = dma.done [#allocation4], 256
    $region41: #{tpu_custom_call.1} parent=1 // pred_fallthru
      _
    %524 = vsyncpa [#allocation3], 1
    %525 = vsyncpa [#allocation6], 1
    %526 = vsyncpa [#allocation9], 1
    %527 = vsyncpa [#allocation4], 1

</llo_original>
